<compile_context>
chip_gen: v6e
topology: v6e:2x2x1
jax: 0.10.0
libtpu: 0.0.40
codegen_flags: <defaults>
</compile_context>

<pallas_src>
import math

import jax
import jax.numpy as jnp
from jax.experimental import pallas as pl
from jax.experimental.pallas import tpu as pltpu


def _round_up(x, m):
    return ((x + m - 1) // m) * m


def _rbf_kernel(d_ref, expand_ref, scale_ref, shift_ref, pref_ref, out_ref):
    """One grid step.

    d_ref:      (TR, R)  f32   R consecutive pair distances per packed row
    expand_ref: (R, W)   f32   0/1 one-hot expand matrix: E[j, j*K + k] = 1
    scale_ref:  (1, W)   f32   1/(width*sqrt(2)), tiled R times along lanes
    shift_ref:  (1, W)   f32   center * scale,    tiled R times along lanes
    pref_ref:   (1,)     f32   prefactor (SMEM scalar)
    out_ref:    (TR, W)        lane-dense view of the [P, K] output
    """
    # Bit-exact lane expansion on the (otherwise idle) MXU:
    # d_exp[t, j*K + k] = d[t, j].  A 0/1 matrix with a single nonzero per
    # column reproduces the f32 input exactly.
    d_exp = jnp.dot(d_ref[...], expand_ref[...],
                    preferred_element_type=jnp.float32)          # (TR, W)

    # Gaussian RBF with folded constants (VPU mul/sub/mul + EUP exp).
    y = d_exp * scale_ref[...] - shift_ref[...]                  # (TR, W)
    out_ref[...] = (pref_ref[0] * jnp.exp(-(y * y))).astype(out_ref.dtype)


def radial_basis_function(distances, centers, widths, prefactor=1.0, *,
                          max_tile_rows=4096, out_dtype=jnp.float32,
                          min_programs=2):
    """Gaussian RBF forward pass (modelforge RadialBasisFunction).

    distances: [P, 1] float, nanometers
    centers:   [K] float
    widths:    [K] float
    prefactor: python float or scalar array (works for the trainable case too)
    returns:   [P, K] out_dtype   (use out_dtype=jnp.bfloat16 to halve the
               dominant HBM write traffic when downstream tolerates bf16)
    """
    P = distances.shape[0]
    K = centers.shape[0]
    assert distances.ndim == 2 and distances.shape[1] == 1
    assert widths.shape == (K,)

    # Pack R pairs per packed row so each output row is R*K lanes, a multiple
    # of 128 (lane-dense, unmasked vst).
    R = 128 // math.gcd(128, K)
    W = R * K

    # Sublane multiple: 16 rows for bf16 output (full packed [16,128] vregs),
    # 8 rows for f32.
    row_mult = 16 if out_dtype == jnp.bfloat16 else 8
    assert max_tile_rows >= row_mult

    rows_needed = -(-P // R)
    rows = _round_up(max(rows_needed, row_mult), row_mult)

    tile_rows = min(_round_up(max_tile_rows, row_mult), rows)
    num_programs = -(-rows // tile_rows)
    # Keep >= min_programs grid programs when there is more than one
    # sublane-multiple of work, so v7x's two TensorCores both get work
    # (harmless ~0.35 us extra step on 1-TC v5e/v6e).
    if rows > row_mult and num_programs < min_programs:
        tile_rows = max(row_mult, _round_up(-(-rows // min_programs), row_mult))
        num_programs = -(-rows // tile_rows)
    rows_padded = tile_rows * num_programs
    p_padded = rows_padded * R
    grid = (num_programs,)

    d = distances.astype(jnp.float32)
    if p_padded != P:
        d = jnp.pad(d, ((0, p_padded - P), (0, 0)))   # padded rows sliced off below
    d_packed = d.reshape(rows_padded, R)              # free row-major reshape

    # Fold constants: exp(-0.5*((d-c)/w)^2) == exp(-((d*s - c*s)^2)),
    # s = 1/(w*sqrt(2)).
    scale = (1.0 / widths.astype(jnp.float32)) / jnp.sqrt(jnp.float32(2.0))   # [K]
    shift = centers.astype(jnp.float32) * scale                               # [K]
    scale_t = jnp.tile(scale[None, :], (1, R))                                # (1, W)
    shift_t = jnp.tile(shift[None, :], (1, R))                                # (1, W)

    # One-hot expand matrix: expand[j, w] = 1 iff w // K == j (i.e. lane w
    # belongs to packed pair j).  0/1 in f32 keeps the MXU path bit-exact.
    lane = jnp.arange(W, dtype=jnp.int32)
    expand = (lane[None, :] // K ==
              jnp.arange(R, dtype=jnp.int32)[:, None]).astype(jnp.float32)    # (R, W)

    pref = jnp.reshape(jnp.asarray(prefactor, dtype=jnp.float32), (1,))       # SMEM scalar

    out = pl.pallas_call(
        _rbf_kernel,
        out_shape=jax.ShapeDtypeStruct((rows_padded, W), out_dtype),
        grid_spec=pltpu.PrefetchScalarGridSpec(
            num_scalar_prefetch=0,
            grid=grid,
            in_specs=[
                pl.BlockSpec((tile_rows, R), lambda i: (i, 0)),        # packed distances
                pl.BlockSpec((R, W), lambda i: (0, 0)),                # one-hot expand
                pl.BlockSpec((1, W), lambda i: (0, 0)),                # scale (tiled)
                pl.BlockSpec((1, W), lambda i: (0, 0)),                # shift (tiled)
                pl.BlockSpec(memory_space=pltpu.MemorySpace.SMEM),     # prefactor
            ],
            out_specs=pl.BlockSpec((tile_rows, W), lambda i: (i, 0)),  # lane-dense output
        ),
        compiler_params=pltpu.CompilerParams(
            dimension_semantics=("parallel",),
        ),
    )(d_packed, expand, scale_t, shift_t, pref)

    # TODO(synk): fuse the downstream [K, out_features] linear layer into this
    # kernel (accumulate dot(rbf_tile, W_proj) per grid step) to avoid the HBM
    # round trip of the [P, K] tensor -- it dominates the HBM traffic here.

    # Free reshape back to the module's [P, K] layout; drop padded rows.
    return out.reshape(p_padded, K)[:P]


def radial_basis_function_ref(distances, centers, widths, prefactor=1.0):
    x = (distances - centers[None, :]) / widths[None, :]
    return prefactor * jnp.exp(-0.5 * x * x)


if __name__ == "__main__":
    key = jax.random.PRNGKey(0)

    number_of_pairs = 256
    number_of_radial_basis_functions = 16
    cutoff_nm = 0.5  # nanometers

    # Deterministic parameter init (synthetic, mirrors module __init__ shapes):
    # centers evenly spaced in [0, cutoff], constant widths, prefactor buffer = 1.0
    centers = jnp.linspace(0.0, cutoff_nm, number_of_radial_basis_functions,
                           dtype=jnp.float32)
    widths = jnp.full((number_of_radial_basis_functions,),
                      cutoff_nm / number_of_radial_basis_functions,
                      dtype=jnp.float32)
    prefactor = 1.0

    # distances: [number_of_pairs, 1], positive, nanometers
    distances = jax.random.uniform(
        key, (number_of_pairs, 1), dtype=jnp.float32,
        minval=0.01, maxval=cutoff_nm)

    ref = radial_basis_function_ref(distances, centers, widths, prefactor)

    # f32 path (module-faithful semantics, strict tolerance).
    out = radial_basis_function(distances, centers, widths, prefactor)
    out = jax.block_until_ready(out)
    assert out.shape == (number_of_pairs, number_of_radial_basis_functions)
    assert jnp.allclose(out, ref, atol=1e-5, rtol=1e-5), float(
        jnp.max(jnp.abs(out - ref)))

    # bf16 output path (halves the dominant HBM write traffic); loose tolerance.
    out_bf16 = radial_basis_function(distances, centers, widths, prefactor,
                                     out_dtype=jnp.bfloat16)
    out_bf16 = jax.block_until_ready(out_bf16)
    assert out_bf16.shape == (number_of_pairs, number_of_radial_basis_functions)
    assert jnp.allclose(out_bf16.astype(jnp.float32), ref, atol=1e-2, rtol=1e-2)

    print("KERNEL_OK")
</pallas_src>

<mosaic_0001>
module attributes {stable_mosaic.version = 11 : i64} {
  func.func @_rbf_kernel(%arg0: i32, %arg1: memref<16x8xf32, #tpu.memory_space<vmem>>, %arg2: memref<8x128xf32, #tpu.memory_space<vmem>>, %arg3: memref<1x128xf32, #tpu.memory_space<vmem>>, %arg4: memref<1x128xf32, #tpu.memory_space<vmem>>, %arg5: memref<1xf32, #tpu.memory_space<smem>>, %arg6: memref<16x128xf32, #tpu.memory_space<vmem>>) attributes {dimension_semantics = [#tpu.dimension_semantics<parallel>], iteration_bounds = array<i64: 2>, scalar_prefetch = 0 : i64, scratch_operands = 0 : i64, tpu.core_type = #tpu.core_type<tc>, window_params = [{transform_indices = @transform_0, window_bounds = array<i64: 16, 8>}, {pipeline_mode = #tpu.pipeline_mode<synchronous>, transform_indices = @transform_1, window_bounds = array<i64: 8, 128>}, {pipeline_mode = #tpu.pipeline_mode<synchronous>, transform_indices = @transform_2, window_bounds = array<i64: 1, 128>}, {pipeline_mode = #tpu.pipeline_mode<synchronous>, transform_indices = @transform_3, window_bounds = array<i64: 1, 128>}, {transform_indices = @transform_4, window_bounds = array<i64: 1>}, {transform_indices = @transform_5, window_bounds = array<i64: 16, 128>}]} {
    %c0 = arith.constant 0 : index
    %c0_0 = arith.constant 0 : index
    %0 = vector.load %arg1[%c0, %c0_0] : memref<16x8xf32, #tpu.memory_space<vmem>>, vector<16x8xf32>
    %c0_1 = arith.constant 0 : index
    %c0_2 = arith.constant 0 : index
    %1 = vector.load %arg2[%c0_1, %c0_2] : memref<8x128xf32, #tpu.memory_space<vmem>>, vector<8x128xf32>
    %cst = arith.constant dense<0.000000e+00> : vector<16x128xf32>
    %2 = tpu.matmul %0, %1, %cst {dimension_numbers = #tpu.dot_dimension_numbers<[1], [0], [0], [1], [0, 0, 1, 1], [], []>} : vector<16x8xf32>, vector<8x128xf32>, vector<16x128xf32> -> vector<16x128xf32>
    %c0_3 = arith.constant 0 : index
    %c0_4 = arith.constant 0 : index
    %3 = vector.load %arg3[%c0_3, %c0_4] : memref<1x128xf32, #tpu.memory_space<vmem>>, vector<1x128xf32>
    %4 = vector.broadcast %3 : vector<1x128xf32> to vector<16x128xf32>
    %5 = arith.mulf %2, %4 : vector<16x128xf32>
    %c0_5 = arith.constant 0 : index
    %c0_6 = arith.constant 0 : index
    %6 = vector.load %arg4[%c0_5, %c0_6] : memref<1x128xf32, #tpu.memory_space<vmem>>, vector<1x128xf32>
    %7 = vector.broadcast %6 : vector<1x128xf32> to vector<16x128xf32>
    %8 = arith.subf %5, %7 : vector<16x128xf32>
    %c0_7 = arith.constant 0 : index
    %9 = memref.load %arg5[%c0_7] : memref<1xf32, #tpu.memory_space<smem>>
    %10 = arith.mulf %8, %8 : vector<16x128xf32>
    %cst_8 = arith.constant 0.000000e+00 : f32
    %11 = vector.broadcast %cst_8 : f32 to vector<16x128xf32>
    %12 = arith.subf %11, %10 : vector<16x128xf32>
    %13 = math.exp %12 : vector<16x128xf32>
    %14 = vector.broadcast %9 : f32 to vector<16x128xf32>
    %15 = arith.mulf %14, %13 : vector<16x128xf32>
    %c0_9 = arith.constant 0 : index
    %c0_10 = arith.constant 0 : index
    %16 = vector.load %arg6[%c0_9, %c0_10] : memref<16x128xf32, #tpu.memory_space<vmem>>, vector<16x128xf32>
    tpu.vector_store %arg6[%c0_9, %c0_10], %15 {strides = array<i32>} : memref<16x128xf32, #tpu.memory_space<vmem>>, vector<16x128xf32>,
    return
  }
  func.func @transform_0(%arg0: i32) -> (i32, i32) {
    %c0_i32 = arith.constant 0 : i32
    %c0_i32_0 = arith.constant 0 : i32
    return %arg0, %c0_i32 : i32, i32
  }
  func.func @transform_1(%arg0: i32) -> (i32, i32) {
    %c0_i32 = arith.constant 0 : i32
    %c0_i32_0 = arith.constant 0 : i32
    %c0_i32_1 = arith.constant 0 : i32
    return %c0_i32, %c0_i32_0 : i32, i32
  }
  func.func @transform_2(%arg0: i32) -> (i32, i32) {
    %c0_i32 = arith.constant 0 : i32
    %c0_i32_0 = arith.constant 0 : i32
    %c0_i32_1 = arith.constant 0 : i32
    return %c0_i32, %c0_i32_0 : i32, i32
  }
  func.func @transform_3(%arg0: i32) -> (i32, i32) {
    %c0_i32 = arith.constant 0 : i32
    %c0_i32_0 = arith.constant 0 : i32
    %c0_i32_1 = arith.constant 0 : i32
    return %c0_i32, %c0_i32_0 : i32, i32
  }
  func.func @transform_4(%arg0: i32) -> i32 {
    %c0_i32 = arith.constant 0 : i32
    %c0_i32_0 = arith.constant 0 : i32
    return %c0_i32 : i32
  }
  func.func @transform_5(%arg0: i32) -> (i32, i32) {
    %c0_i32 = arith.constant 0 : i32
    %c0_i32_0 = arith.constant 0 : i32
    return %arg0, %c0_i32 : i32, i32
  }
}

</mosaic_0001>

<llo_original>
// kernel: tpu_custom_call.1
$region0: #{tpu_custom_call.1}
  #allocation0 [shape = 'u32[]', space=smem, size = 0x4, offset = 0x4, fixed_abs, tag = 'smem constant byte address 0x4 - core index']
  #allocation1 [shape = 'u32[144,128]{1,0:T(1,128)}', space=vmem, size = 0x12000, scoped, tag = 'internal scratch']
  #allocation2 [shape = 'f32[1]{0:T(128)S(6)}', space=smem, size = 0x200, scoped, tag = 'scoped memory for tpu_custom_call.1']
  %s0 = inlined_call_operand.vmem [shape: f32[32,8], index: 0, kind: input, shape index: {}]
  %s1 = inlined_call_operand.vmem [shape: f32[8,128], index: 1, kind: input, shape index: {}]
  %s2 = inlined_call_operand.vmem [shape: f32[1,128], index: 2, kind: input, shape index: {}]
  %s3 = inlined_call_operand.vmem [shape: f32[1,128], index: 3, kind: input, shape index: {}]
  %s4 = inlined_call_operand.<no memory space> [shape: f32[1], index: 4, kind: input, shape index: {}]
  %s5 = inlined_call_operand.hbm [shape: f32[32,128], index: 5, kind: output, shape index: {}]
  %s6 = sld [smem:[#allocation0]]
  $region53: #{tpu_custom_call.1} parent=0
    _
  %s8 = ssub.s32 1, %s6
  %s9 = scalar_select 0, %s8, %s6
  %10 = sst [smem:[#allocation2]] %s4
  $region1: #{tpu_custom_call.1} parent=0
    #allocation3 [shape = 'u8[16384]{0}', space=vmem, size = 0x4000, scoped, tag = 'output window, operand 0']
    #allocation4 [shape = 's32[2]{0}', space=sflag, size = 0x8, scoped, tag = 'scoped memory for tpu_custom_call.1']
    %11 = vsyncpa [#allocation4], 0
    %s12 = scalar_lea.sflag [#allocation4], 1
    %13 = vsyncpa %s12, 0
    loop: start=0, step=1, limit=4
    $region2: #{tpu_custom_call.1} parent=1 // loop_pre_header
      _
    $region3: #{tpu_custom_call.1} parent=1 // loop_header
      %s15 = sphi 0, %s19
      %p16 = scmp.ge.s32.totalorder %s15, 4
      %s25 = sphi 0, %s27
      %s28 = sphi 0, %s25
      %s29 = sphi 0, %s28
      %s45 = sphi 0, %s29
      %s49 = sphi 0, %s49
      %s51 = sphi 0, %s49
      %s52 = sphi 0, %s51
      %s66 = sphi 0, %s52
      %s70 = sphi 0, %s70
      %s72 = sphi 0, %s70
      %s73 = sphi 0, %s72
      %s87 = sphi 0, %s73
      %s91 = sphi 0, %s91
      %s93 = sphi 0, %s91
      %s94 = sphi 0, %s93
      %s108 = sphi 0, %s94
      %s112 = sphi 0, %s112
      %s114 = sphi 0, %s112
      %s115 = sphi 0, %s114
      %s129 = sphi 0, %s115
      %s135 = sphi 0, %s137
      %s138 = sphi 0, %s135
      %s139 = sphi 0, %s138
      %s155 = sphi 0, %s139
    $region4: #{tpu_custom_call.1} parent=1 // loop_header_branch
      %18 = sbr.rel (%p16) target = $region8
    $region5: #{tpu_custom_call.1} parent=1 // loop_body
      %s20 = ssub.s32 %s15, 1
      %s21 = ssub.s32 %s15, 2
      %s22 = sadd.s32 %s15, 1
      %s23 = ssub.s32 %s15, %s22
      %p24 = scmp.eq.s32.totalorder %s23, 0
      %s26 = sadd.s32 %s25, 1
      %s27 = scalar_select %p24, %s25, %s26
      %p30 = pneg %p24
      %p31 = scmp.eq.s32.totalorder %s15, 1
      %p32 = por %p30, %p31
      %p33 = scmp.ne.s32.totalorder %s25, %s28
      %p34 = scmp.eq.s32.totalorder %s15, 0
      %p35 = por %p33, %p34
      %p36 = scmp.ne.s32.totalorder %s25, %s28
      %p37 = scmp.eq.s32.totalorder %s20, 1
      %p38 = por %p36, %p37
      %p39 = scmp.ne.s32.totalorder %s28, %s29
      %p40 = scmp.eq.s32.totalorder %s20, 0
      %p41 = por %p39, %p40
      %p42 = scmp.ne.s32.totalorder %s28, %s29
      %p43 = scmp.eq.s32.totalorder %s21, 1
      %p44 = por %p42, %p43
      %p46 = scmp.ne.s32.totalorder %s29, %s45
      %p47 = scmp.eq.s32.totalorder %s21, 0
      %p48 = por %p46, %p47
      %s50 = sadd.s32 %s49, 1
      %p53 = scmp.eq.s32.totalorder %s15, 1
      %p54 = scmp.ne.s32.totalorder %s49, %s51
      %p55 = scmp.eq.s32.totalorder %s15, 0
      %p56 = por %p54, %p55
      %p57 = scmp.ne.s32.totalorder %s49, %s51
      %p58 = scmp.eq.s32.totalorder %s20, 1
      %p59 = por %p57, %p58
      %p60 = scmp.ne.s32.totalorder %s51, %s52
      %p61 = scmp.eq.s32.totalorder %s20, 0
      %p62 = por %p60, %p61
      %p63 = scmp.ne.s32.totalorder %s51, %s52
      %p64 = scmp.eq.s32.totalorder %s21, 1
      %p65 = por %p63, %p64
      %p67 = scmp.ne.s32.totalorder %s52, %s66
      %p68 = scmp.eq.s32.totalorder %s21, 0
      %p69 = por %p67, %p68
      %s71 = sadd.s32 %s70, 1
      %p74 = scmp.eq.s32.totalorder %s15, 1
      %p75 = scmp.ne.s32.totalorder %s70, %s72
      %p76 = scmp.eq.s32.totalorder %s15, 0
      %p77 = por %p75, %p76
      %p78 = scmp.ne.s32.totalorder %s70, %s72
      %p79 = scmp.eq.s32.totalorder %s20, 1
      %p80 = por %p78, %p79
      %p81 = scmp.ne.s32.totalorder %s72, %s73
      %p82 = scmp.eq.s32.totalorder %s20, 0
      %p83 = por %p81, %p82
      %p84 = scmp.ne.s32.totalorder %s72, %s73
      %p85 = scmp.eq.s32.totalorder %s21, 1
      %p86 = por %p84, %p85
      %p88 = scmp.ne.s32.totalorder %s73, %s87
      %p89 = scmp.eq.s32.totalorder %s21, 0
      %p90 = por %p88, %p89
      %s92 = sadd.s32 %s91, 1
      %p95 = scmp.eq.s32.totalorder %s15, 1
      %p96 = scmp.ne.s32.totalorder %s91, %s93
      %p97 = scmp.eq.s32.totalorder %s15, 0
      %p98 = por %p96, %p97
      %p99 = scmp.ne.s32.totalorder %s91, %s93
      %p100 = scmp.eq.s32.totalorder %s20, 1
      %p101 = por %p99, %p100
      %p102 = scmp.ne.s32.totalorder %s93, %s94
      %p103 = scmp.eq.s32.totalorder %s20, 0
      %p104 = por %p102, %p103
      %p105 = scmp.ne.s32.totalorder %s93, %s94
      %p106 = scmp.eq.s32.totalorder %s21, 1
      %p107 = por %p105, %p106
      %p109 = scmp.ne.s32.totalorder %s94, %s108
      %p110 = scmp.eq.s32.totalorder %s21, 0
      %p111 = por %p109, %p110
      %s113 = sadd.s32 %s112, 1
      %p116 = scmp.eq.s32.totalorder %s15, 1
      %p117 = scmp.ne.s32.totalorder %s112, %s114
      %p118 = scmp.eq.s32.totalorder %s15, 0
      %p119 = por %p117, %p118
      %p120 = scmp.ne.s32.totalorder %s112, %s114
      %p121 = scmp.eq.s32.totalorder %s20, 1
      %p122 = por %p120, %p121
      %p123 = scmp.ne.s32.totalorder %s114, %s115
      %p124 = scmp.eq.s32.totalorder %s20, 0
      %p125 = por %p123, %p124
      %p126 = scmp.ne.s32.totalorder %s114, %s115
      %p127 = scmp.eq.s32.totalorder %s21, 1
      %p128 = por %p126, %p127
      %p130 = scmp.ne.s32.totalorder %s115, %s129
      %p131 = scmp.eq.s32.totalorder %s21, 0
      %p132 = por %p130, %p131
      %s133 = ssub.s32 %s15, %s22
      %p134 = scmp.eq.s32.totalorder %s133, 0
      %s136 = sadd.s32 %s135, 1
      %s137 = scalar_select %p134, %s135, %s136
      %p140 = pneg %p134
      %p141 = scmp.eq.s32.totalorder %s15, 1
      %p142 = por %p140, %p141
      %p143 = scmp.ne.s32.totalorder %s135, %s138
      %p144 = scmp.eq.s32.totalorder %s15, 0
      %p145 = por %p143, %p144
      %p146 = scmp.ne.s32.totalorder %s135, %s138
      %p147 = scmp.eq.s32.totalorder %s20, 1
      %p148 = por %p146, %p147
      %p149 = scmp.ne.s32.totalorder %s138, %s139
      %p150 = scmp.eq.s32.totalorder %s20, 0
      %p151 = por %p149, %p150
      %p152 = scmp.ne.s32.totalorder %s138, %s139
      %p153 = scmp.eq.s32.totalorder %s21, 1
      %p154 = por %p152, %p153
      %p156 = scmp.ne.s32.totalorder %s139, %s155
      %p157 = scmp.eq.s32.totalorder %s21, 0
      %p158 = por %p156, %p157
      %p159 = scmp.le.s32.totalorder 1, %s15
      %p160 = scmp.lt.s32.totalorder %s15, 3
      %p161 = pnand %p159, %p160
      %p162 = pneg %p161
      // Predicated region
      $region9: #{tpu_custom_call.1} parent=5 // pred_check
        _
      $region10: #{tpu_custom_call.1} parent=5 // pred_check_branch
        %164 = sbr.rel (%p161) target = $region12
      $region11: #{tpu_custom_call.1} parent=5 // pred_region
        %s165 = ssub.s32 %s15, 1
        // Predicated region
        $region13: #{tpu_custom_call.1} parent=11 // pred_check
          %p166 = pneg %p62
        $region14: #{tpu_custom_call.1} parent=11 // pred_check_branch
          %168 = sbr.rel (%p166) target = $region16
        $region15: #{tpu_custom_call.1} parent=11 // pred_region
          _
        $region16: #{tpu_custom_call.1} parent=11 // pred_fallthru
          _
        // Predicated region
        $region17: #{tpu_custom_call.1} parent=11 // pred_check
          %p169 = pneg %p83
        $region18: #{tpu_custom_call.1} parent=11 // pred_check_branch
          %171 = sbr.rel (%p169) target = $region20
        $region19: #{tpu_custom_call.1} parent=11 // pred_region
          _
        $region20: #{tpu_custom_call.1} parent=11 // pred_fallthru
          _
        // Predicated region
        $region21: #{tpu_custom_call.1} parent=11 // pred_check
          %p172 = pneg %p104
        $region22: #{tpu_custom_call.1} parent=11 // pred_check_branch
          %174 = sbr.rel (%p172) target = $region24
        $region23: #{tpu_custom_call.1} parent=11 // pred_region
          _
        $region24: #{tpu_custom_call.1} parent=11 // pred_fallthru
          _
        // Predicated region
        $region25: #{tpu_custom_call.1} parent=11 // pred_check
          %p175 = pneg %p125
        $region26: #{tpu_custom_call.1} parent=11 // pred_check_branch
          %177 = sbr.rel (%p175) target = $region28
        $region27: #{tpu_custom_call.1} parent=11 // pred_region
          _
        $region28: #{tpu_custom_call.1} parent=11 // pred_fallthru
          _
      $region12: #{tpu_custom_call.1} parent=5 // pred_fallthru
        _
      %p178 = scmp.lt.s32.totalorder %s15, 2
      // Predicated region
      $region29: #{tpu_custom_call.1} parent=5 // pred_check
        %p179 = pneg %p178
      $region30: #{tpu_custom_call.1} parent=5 // pred_check_branch
        %181 = sbr.rel (%p179) target = $region32
      $region31: #{tpu_custom_call.1} parent=5 // pred_region
        // Predicated region
        $region33: #{tpu_custom_call.1} parent=31 // pred_check
          %p182 = pneg %p35
        $region34: #{tpu_custom_call.1} parent=31 // pred_check_branch
          %184 = sbr.rel (%p182) target = $region36
        $region35: #{tpu_custom_call.1} parent=31 // pred_region
          %s185 = smul.u32 2, %s15
          %p186 = scmp.lt.s32.totalorder %s185, 3
          %s187 = scalar_select %p186, %s185, 3
          %s188 = smul.addr %s187, 8
          %s189 = scalar_lea.vmem %s0, %s188
          %s190 = smul.u32 2, %s15
        $region36: #{tpu_custom_call.1} parent=31 // pred_fallthru
          _
      $region32: #{tpu_custom_call.1} parent=5 // pred_fallthru
        _
      %p191 = scmp.le.s32.totalorder 1, %s15
      %p192 = scmp.lt.s32.totalorder %s15, 3
      %p193 = pnand %p191, %p192
      %p194 = pneg %p193
      // Predicated region
      $region37: #{tpu_custom_call.1} parent=5 // pred_check
        _
      $region38: #{tpu_custom_call.1} parent=5 // pred_check_branch
        %196 = sbr.rel (%p193) target = $region40
      $region39: #{tpu_custom_call.1} parent=5 // pred_region
        %s197 = ssub.s32 %s15, 1
        %s198 = smul.u32 2, %s20
        %p199 = scmp.lt.s32.totalorder %s198, 3
        %s200 = scalar_select %p199, %s198, 3
        %s201 = smul.addr %s200, 8
        %s202 = scalar_lea.vmem %s0, %s201
        %p203 = pneg %p41
        %p204 = pneg %p38
        %p205 = pneg %p62
        %p206 = pneg %p59
        %p207 = pneg %p83
        %p208 = pneg %p80
        %p209 = pneg %p104
        %p210 = pneg %p101
        %p211 = pneg %p125
        %p212 = pneg %p122
        %p213 = pneg %p151
        %p214 = pneg %p148
        %s215 = sand.u32 %s138, 1
        %s216 = scalar_lea.sflag [#allocation4], %s215
        %s217 = sand.u32 %s138, 1
        %s218 = smul.addr %s217, 16
        %s219 = scalar_lea.vmem [#allocation3], %s218
        %s220 = smul.u32 2, %s20
        %p221 = scmp.lt.s32.totalorder %s220, 3
        %s222 = scalar_select %p221, %s220, 3
        %s223 = smul.addr %s222, 8
        %s224 = scalar_lea.vmem %s0, %s223
        %s225 = smul.u32 2, %s20
        %s226 = smul.u32 2, %s20
        %v227 = vld [vmem:[%s224] sm:$0xff]
        %v228 = vld [vmem:[%s224 + $0x8] sm:$0xff]
        %v229 = vld [vmem:[%s1] sm:$0xff]
        %vm230 = vcmask 64512
        %v232 = vsel %vm230, %v227, 0
        %v235 = vsel %vm230, %v228, 0
        %237 = vmatprep.subr.mxu0 0.0
        %238 = vmatpush1.msra.mxu0 0.0
        %239 = vmatprep.subr.mxu0 0.0
        %240 = vmatpush1.msra.mxu0 0.0
        %241 = vmatprep.subr.mxu0 0.0
        %242 = vmatpush1.msra.mxu0 0.0
        %243 = vmatprep.subr.mxu0 0.0
        %244 = vmatpush1.msra.mxu0 0.0
        %245 = vmatprep.subr.mxu0 0.0
        %246 = vmatpush1.msra.mxu0 0.0
        %247 = vmatprep.subr.mxu0 0.0
        %248 = vmatpush1.msra.mxu0 0.0
        %249 = vmatprep.subr.mxu0 0.0
        %250 = vmatpush1.msra.mxu0 0.0
        %251 = vmatprep.subr.mxu0 0.0
        %252 = vmatpush1.msra.mxu0 0.0
        %253 = vmatprep.subr.mxu0 0.0
        %254 = vmatpush1.msra.mxu0 0.0
        %255 = vmatprep.subr.mxu0 0.0
        %256 = vmatpush1.msra.mxu0 0.0
        %257 = vmatprep.subr.mxu0 0.0
        %258 = vmatpush1.msra.mxu0 0.0
        %259 = vmatprep.subr.mxu0 0.0
        %260 = vmatpush1.msra.mxu0 0.0
        %261 = vmatprep.subr.mxu0 0.0
        %262 = vmatpush1.msra.mxu0 0.0
        %263 = vmatprep.subr.mxu0 0.0
        %264 = vmatpush1.msra.mxu0 0.0
        %265 = vmatprep.subr.mxu0 0.0
        %266 = vmatpush1.msra.mxu0 0.0
        %267 = vmatprep.subr.mxu0 0.0
        %268 = vmatpush1.msra.mxu0 %v229
        %269 = vmatprep.subr.mxu0 0.0
        %270 = vmatpush2.msra.mxu0 0.0
        %271 = vmatprep.subr.mxu0 0.0
        %272 = vmatpush2.msra.mxu0 0.0
        %273 = vmatprep.subr.mxu0 0.0
        %274 = vmatpush2.msra.mxu0 0.0
        %275 = vmatprep.subr.mxu0 0.0
        %276 = vmatpush2.msra.mxu0 0.0
        %277 = vmatprep.subr.mxu0 0.0
        %278 = vmatpush2.msra.mxu0 0.0
        %279 = vmatprep.subr.mxu0 0.0
        %280 = vmatpush2.msra.mxu0 0.0
        %281 = vmatprep.subr.mxu0 0.0
        %282 = vmatpush2.msra.mxu0 0.0
        %283 = vmatprep.subr.mxu0 0.0
        %284 = vmatpush2.msra.mxu0 0.0
        %285 = vmatprep.subr.mxu0 0.0
        %286 = vmatpush2.msra.mxu0 0.0
        %287 = vmatprep.subr.mxu0 0.0
        %288 = vmatpush2.msra.mxu0 0.0
        %289 = vmatprep.subr.mxu0 0.0
        %290 = vmatpush2.msra.mxu0 0.0
        %291 = vmatprep.subr.mxu0 0.0
        %292 = vmatpush2.msra.mxu0 0.0
        %293 = vmatprep.subr.mxu0 0.0
        %294 = vmatpush2.msra.mxu0 0.0
        %295 = vmatprep.subr.mxu0 0.0
        %296 = vmatpush2.msra.mxu0 0.0
        %297 = vmatprep.subr.mxu0 0.0
        %298 = vmatpush2.msra.mxu0 0.0
        %299 = vmatprep.subr.mxu0 0.0
        %300 = vmatpush2.msra.mxu0 0.0
        %301 = vmatprep.mubr.f32.mxu0 0.0
        %302 = vmatmul.mubr.f32.gmra.mxu0 %v232
        %v303 = vpop.f32.mrf.mxu0
        %v304 = vadd.f32 0.0, %v303
        %v305 = vpop.f32.mrf.mxu0
        %306 = vmatprep.mubr.f32.mxu0 0.0
        %307 = vmatmul.mubr.f32.gmra.mxu0 %v235
        %v308 = vpop.f32.mrf.mxu0
        %v309 = vadd.f32 0.0, %v308
        %v310 = vpop.f32.mrf.mxu0
        %311 = vdwg.mxu0
        %v312 = vld [vmem:[%s2] sm:$0x1]
        %v314 = vlaneseq
        %v315 = vshrl.u32 %v314, 7
        %v316 = vsub.s32 0, %v315
        %v317 = vrot.slane %v312, %v316
        %v319 = vmul.f32 %v304, %v317
        %v320 = vmul.f32 %v309, %v317
        %v321 = vld [vmem:[%s3] sm:$0x1]
        %v323 = vlaneseq
        %v324 = vshrl.u32 %v323, 7
        %v325 = vsub.s32 0, %v324
        %v326 = vrot.slane %v321, %v325
        %v328 = vsub.f32 %v319, %v326
        %v329 = vsub.f32 %v320, %v326
        %s330 = sld [smem:[#allocation2]]
        %v331 = vmul.f32 %v328, %v328
        %v332 = vmul.f32 %v329, %v329
        %v333 = vsub.f32 0.0, %v331
        %v334 = vsub.f32 0.0, %v332
        %v335 = vmul.f32 %v333, 1.442695
        %v336 = vpow.pop %v335
        %v337 = vmul.f32 %v334, 1.442695
        %v338 = vpow.pop %v337
        %v339 = vstv %s330
        %v340 = vmul.f32 %v339, %v336
        %v341 = vmul.f32 %v339, %v338
        %342 = vst [vmem:[%s219] sm:$0xff] %v340
        %343 = vst [vmem:[%s219 + $0x8] sm:$0xff] %v341
        %s344 = sand.u32 %s138, 1
        %s345 = scalar_lea.sflag [#allocation4], %s344
        %s346 = sand.u32 %s138, 1
        %s347 = smul.addr %s346, 16
        %s348 = scalar_lea.vmem [#allocation3], %s347
        // Predicated region
        $region41: #{tpu_custom_call.1} parent=39 // pred_check
          %p349 = pneg %p148
        $region42: #{tpu_custom_call.1} parent=39 // pred_check_branch
          %351 = sbr.rel (%p349) target = $region44
        $region43: #{tpu_custom_call.1} parent=39 // pred_region
          %s352 = smul.u32 2, %s20
          %s354 = ssub.s32 256, 256
          %355 = vsyncadd %s345, %s354
          %s356 = smul.addr %s352, 128
          %s357 = scalar_lea.hbm %s5, %s356
          %s358 = sshll.u32 %s348, 4
          %s359 = int_to_ptr.vmem [resolvable:$true] %s358
          %364 = dma.vmem_to_hbm [thread:$0]  %s359, 256, %s357, %s345, 128, 128, 8
        $region44: #{tpu_custom_call.1} parent=39 // pred_fallthru
          _
      $region40: #{tpu_custom_call.1} parent=5 // pred_fallthru
        _
      %p365 = scmp.le.s32.totalorder 2, %s15
      // Predicated region
      $region45: #{tpu_custom_call.1} parent=5 // pred_check
        %p366 = pneg %p365
      $region46: #{tpu_custom_call.1} parent=5 // pred_check_branch
        %368 = sbr.rel (%p366) target = $region48
      $region47: #{tpu_custom_call.1} parent=5 // pred_region
        %s369 = ssub.s32 %s15, 2
        // Predicated region
        $region49: #{tpu_custom_call.1} parent=47 // pred_check
          %p370 = pneg %p154
        $region50: #{tpu_custom_call.1} parent=47 // pred_check_branch
          %372 = sbr.rel (%p370) target = $region52
        $region51: #{tpu_custom_call.1} parent=47 // pred_region
          %s373 = sand.u32 %s139, 1
          %s374 = scalar_lea.sflag [#allocation4], %s373
          %s375 = sand.u32 %s139, 1
          %s376 = smul.addr %s375, 16
          %s377 = scalar_lea.vmem [#allocation3], %s376
          %378 = dma.done %s374, 256
        $region52: #{tpu_custom_call.1} parent=47 // pred_fallthru
          _
      $region48: #{tpu_custom_call.1} parent=5 // pred_fallthru
        _
    $region6: #{tpu_custom_call.1} parent=1 // loop_footer
      %s19 = sadd.s32 1, %s15
    $region7: #{tpu_custom_call.1} parent=1 // loop_footer_branch
      %14 = sbr.rel target = $region3
    $region8: #{tpu_custom_call.1} parent=1 // loop_exit
      _
    %379 = vsyncpa [#allocation4], 1
    %s380 = scalar_lea.sflag [#allocation4], 1
    %381 = vsyncpa %s380, 1

</llo_original>
